<compile_context>
chip_gen: v5e
topology: v5e:2x2
jax: 0.10.0
libtpu: 0.0.40
codegen_flags: <defaults>
</compile_context>

<pallas_src>
import jax
import jax.numpy as jnp
from jax.experimental import pallas as pl
from jax.experimental.pallas import tpu as pltpu

LANES = 128            # vreg lane width
MAX_TILE_ROWS = 2048   # 2048 x 128 f32 = 1 MiB per block


def _arange_add_kernel(x_ref, o_ref):
    # x_ref / o_ref: (tile_rows, LANES) tiles in VMEM (last block may be partial;
    # Pallas clips the out-of-range rows on load/store).
    rows, lanes = x_ref.shape
    # Flat element offset of this block within the 1-D array (int32 is exact
    # far beyond the 2^24 f32-precision limit, so it is not the binding term).
    base = pl.program_id(0) * (rows * lanes)
    row_i = jax.lax.broadcasted_iota(jnp.int32, (rows, lanes), 0)
    col_i = jax.lax.broadcasted_iota(jnp.int32, (rows, lanes), 1)
    idx = (base + row_i * lanes + col_i).astype(jnp.float32)
    o_ref[...] = (x_ref[...].astype(jnp.float32) + idx).astype(o_ref.dtype)


def _row_grain(dtype) -> int:
    # Sublane packing granularity: 8 rows for 4-byte, 16 for 2-byte, 32 for 1-byte.
    return 8 * max(1, 4 // jnp.dtype(dtype).itemsize)


def _choose_tile_rows(rows: int, grain: int) -> int:
    """Pick the block height: <= MAX_TILE_ROWS, multiple of `grain`, and small
    enough that the grid has >= 2 steps when there is enough work (v7x megacore)."""
    if rows <= grain:
        return grain
    half = pl.cdiv(rows, 2)
    return min(MAX_TILE_ROWS, pl.cdiv(half, grain) * grain)


def tensor_constructor_forward(x: jax.Array) -> jax.Array:
    """JAX/Pallas equivalent of TensorConstructorModel.forward for 1-D x."""
    assert x.ndim == 1, "reference test uses a 1-D input"
    n = x.shape[0]
    assert n >= 1
    out_dtype = x.dtype if jnp.issubdtype(x.dtype, jnp.floating) else jnp.float32
    # TODO(synk): for n > 2**24, f32 cannot represent every index exactly (same
    # rounding PyTorch hits when promoting an int arange into a float32 add).

    n_pad = pl.cdiv(n, LANES) * LANES
    x_in = x
    if n_pad != n:
        # Ragged tail: pad only to the next 128-lane boundary (< 128 elements).
        # TODO(synk): fuse tail masking into the kernel to avoid this pad+slice
        # pass entirely for ragged n.
        x_in = jnp.pad(x, (0, n_pad - n))
    rows = n_pad // LANES
    x2d = x_in.reshape(rows, LANES)

    grain = _row_grain(x.dtype)
    tile_rows = _choose_tile_rows(rows, grain)
    grid = (pl.cdiv(rows, tile_rows),)

    out2d = pl.pallas_call(
        _arange_add_kernel,
        out_shape=jax.ShapeDtypeStruct((rows, LANES), out_dtype),
        grid=grid,
        in_specs=[pl.BlockSpec((tile_rows, LANES), lambda i: (i, 0))],
        out_specs=pl.BlockSpec((tile_rows, LANES), lambda i: (i, 0)),
        compiler_params=pltpu.CompilerParams(
            dimension_semantics=("parallel",)),
    )(x2d)

    out = out2d.reshape(n_pad)
    if n_pad != n:
        out = out[:n]
    return out


if __name__ == "__main__":
    key = jax.random.PRNGKey(0)

    # Case 1: the exact shape used by the PyTorch test (torch.rand(8)).
    n1 = 8
    x1 = jax.random.uniform(key, (n1,), dtype=jnp.float32)
    y1 = jax.block_until_ready(tensor_constructor_forward(x1))
    e1 = x1 + jnp.arange(n1, dtype=jnp.float32)
    assert y1.shape == (n1,) and y1.dtype == jnp.float32
    assert jnp.allclose(y1, e1), "N=8 mismatch"

    # Case 2: ragged n (not a multiple of 128) -> minimal pad, 2-step grid,
    # partial last block.
    n2 = 33333
    x2 = jax.random.uniform(jax.random.PRNGKey(0), (n2,), dtype=jnp.float32)
    y2 = jax.block_until_ready(tensor_constructor_forward(x2))
    e2 = x2 + jnp.arange(n2, dtype=jnp.float32)
    assert y2.shape == (n2,) and y2.dtype == jnp.float32
    assert jnp.allclose(y2, e2), "ragged-N mismatch"

    # Case 3: n an exact multiple of 128 -> zero-copy path (no pad, no slice),
    # 2-step grid so both v7x TensorCores get work.
    n3 = 8192
    x3 = jax.random.uniform(jax.random.PRNGKey(0), (n3,), dtype=jnp.float32)
    y3 = jax.block_until_ready(tensor_constructor_forward(x3))
    e3 = x3 + jnp.arange(n3, dtype=jnp.float32)
    assert y3.shape == (n3,) and y3.dtype == jnp.float32
    assert jnp.allclose(y3, e3), "multiple-of-128 mismatch"

    print("KERNEL_OK")
</pallas_src>

<mosaic_0001>
module attributes {stable_mosaic.version = 11 : i64} {
  func.func @_arange_add_kernel(%arg0: i32, %arg1: memref<8x128xf32, #tpu.memory_space<vmem>>, %arg2: memref<8x128xf32, #tpu.memory_space<vmem>>) attributes {dimension_semantics = [#tpu.dimension_semantics<parallel>], iteration_bounds = array<i64: 1>, scalar_prefetch = 0 : i64, scratch_operands = 0 : i64, tpu.core_type = #tpu.core_type<tc>, window_params = [{transform_indices = @transform_0, window_bounds = array<i64: 8, 128>}, {transform_indices = @transform_1, window_bounds = array<i64: 8, 128>}]} {
    %c1024_i32 = arith.constant 1024 : i32
    %0 = arith.muli %arg0, %c1024_i32 : i32
    %1 = tpu.iota {dimensions = array<i32: 0>} : vector<8x128xi32>
    %2 = tpu.iota {dimensions = array<i32: 1>} : vector<8x128xi32>
    %c128_i32 = arith.constant 128 : i32
    %3 = vector.broadcast %c128_i32 : i32 to vector<8x128xi32>
    %4 = arith.muli %1, %3 : vector<8x128xi32>
    %5 = vector.broadcast %0 : i32 to vector<8x128xi32>
    %6 = arith.addi %5, %4 : vector<8x128xi32>
    %7 = arith.addi %6, %2 : vector<8x128xi32>
    %8 = arith.sitofp %7 : vector<8x128xi32> to vector<8x128xf32>
    %c0 = arith.constant 0 : index
    %c0_0 = arith.constant 0 : index
    %9 = vector.load %arg1[%c0, %c0_0] : memref<8x128xf32, #tpu.memory_space<vmem>>, vector<8x128xf32>
    %10 = arith.addf %9, %8 : vector<8x128xf32>
    %c0_1 = arith.constant 0 : index
    %c0_2 = arith.constant 0 : index
    %11 = vector.load %arg2[%c0_1, %c0_2] : memref<8x128xf32, #tpu.memory_space<vmem>>, vector<8x128xf32>
    tpu.vector_store %arg2[%c0_1, %c0_2], %10 {strides = array<i32>} : memref<8x128xf32, #tpu.memory_space<vmem>>, vector<8x128xf32>,
    return
  }
  func.func @transform_0(%arg0: i32) -> (i32, i32) {
    %c0_i32 = arith.constant 0 : i32
    %c0_i32_0 = arith.constant 0 : i32
    return %arg0, %c0_i32 : i32, i32
  }
  func.func @transform_1(%arg0: i32) -> (i32, i32) {
    %c0_i32 = arith.constant 0 : i32
    %c0_i32_0 = arith.constant 0 : i32
    return %arg0, %c0_i32 : i32, i32
  }
}

</mosaic_0001>

<llo_original>
// kernel: tpu_custom_call.1
$region0: #{tpu_custom_call.1}
  #allocation0 [shape = 'u32[]', space=smem, size = 0x4, offset = 0x4, fixed_abs, tag = 'smem constant byte address 0x4 - core index']
  #allocation1 [shape = 'u32[72,128]{1,0:T(1,128)}', space=vmem, size = 0x9000, scoped, tag = 'internal scratch']
  %s0 = inlined_call_operand.hbm [shape: f32[1,128], index: 0, kind: input, shape index: {}]
  %s1 = inlined_call_operand.hbm [shape: f32[1,128], index: 1, kind: output, shape index: {}]
  %s2 = sld [smem:[#allocation0]]
  $region18: #{tpu_custom_call.1} parent=0
    _
  %s4 = ssub.s32 1, %s2
  %s5 = scalar_select 0, %s4, %s2
  $region1: #{tpu_custom_call.1} parent=0
    #allocation2 [shape = 'u8[4096]{0}', space=vmem, size = 0x1000, scoped, tag = 'input window, operand 0, single buffered']
    #allocation3 [shape = 's32[1]{0}', space=sflag, size = 0x4, scoped, tag = 'scoped memory for tpu_custom_call.1']
    #allocation4 [shape = 's32[1]{0}', space=sflag, size = 0x4, scoped, tag = 'scoped memory for tpu_custom_call.1']
    #allocation5 [shape = 'u8[4096]{0}', space=vmem, size = 0x1000, scoped, tag = 'output window, operand 0, single buffered']
    %6 = vsyncpa [#allocation3], 0
    %7 = vsyncpa [#allocation4], 0
    // Predicated region
    $region2: #{tpu_custom_call.1} parent=1 // pred_check
      _
    $region3: #{tpu_custom_call.1} parent=1 // pred_check_branch
      %9 = sbr.rel (0) target = $region5
    $region4: #{tpu_custom_call.1} parent=1 // pred_region
      %11 = vsyncadd [#allocation3], 112
      %s12 = sshll.u32 %s0, 4
      %s13 = int_to_ptr.hbm [resolvable:$true] %s12
      %s14 = sshll.u32 [#allocation2], 4
      %s15 = int_to_ptr.vmem [resolvable:$true] %s14
      %20 = dma.hbm_to_vmem [thread:$0]  %s13, 16, %s15, [#allocation3], 16, 16, 1
    $region5: #{tpu_custom_call.1} parent=1 // pred_fallthru
      _
    // Predicated region
    $region6: #{tpu_custom_call.1} parent=1 // pred_check
      _
    $region7: #{tpu_custom_call.1} parent=1 // pred_check_branch
      %22 = sbr.rel (0) target = $region9
    $region8: #{tpu_custom_call.1} parent=1 // pred_region
      %24 = dma.done [#allocation3], 128
    $region9: #{tpu_custom_call.1} parent=1 // pred_fallthru
      _
    %s25 = smul.u32 0, 1024
    %v26 = vlaneseq
    %v27 = vshrl.u32 %v26, 7
    %v28 = vlaneseq
    %v29 = vand.u32 %v28, 127
    %v30 = vmul.u32 %v27, 128
    %v31 = vstv %s25
    %v32 = vadd.s32 %v31, %v30
    %v33 = vadd.s32 %v32, %v29
    %v34 = vcvt.s32.f32 %v33
    %v35 = vld [vmem:[#allocation2] sm:$0xff]
    %v36 = vadd.f32 %v35, %v34
    %37 = vst [vmem:[#allocation5] sm:$0xff] %v36
    // Predicated region
    $region10: #{tpu_custom_call.1} parent=1 // pred_check
      _
    $region11: #{tpu_custom_call.1} parent=1 // pred_check_branch
      %39 = sbr.rel (0) target = $region13
    $region12: #{tpu_custom_call.1} parent=1 // pred_region
      %41 = vsyncadd [#allocation4], 112
      %s42 = sshll.u32 [#allocation5], 4
      %s43 = int_to_ptr.vmem [resolvable:$true] %s42
      %s44 = sshll.u32 %s1, 4
      %s45 = int_to_ptr.hbm [resolvable:$true] %s44
      %50 = dma.vmem_to_hbm [thread:$0]  %s43, 16, %s45, [#allocation4], 16, 16, 1
    $region13: #{tpu_custom_call.1} parent=1 // pred_fallthru
      _
    // Predicated region
    $region14: #{tpu_custom_call.1} parent=1 // pred_check
      _
    $region15: #{tpu_custom_call.1} parent=1 // pred_check_branch
      %52 = sbr.rel (0) target = $region17
    $region16: #{tpu_custom_call.1} parent=1 // pred_region
      %54 = dma.done [#allocation4], 128
    $region17: #{tpu_custom_call.1} parent=1 // pred_fallthru
      _
    %55 = vsyncpa [#allocation3], 1
    %56 = vsyncpa [#allocation4], 1

</llo_original>
